<compile_context>
chip_gen: v6e
topology: v6e:2x2x1
jax: 0.10.0
libtpu: 0.0.40
codegen_flags: <defaults>
</compile_context>

<pallas_src>
import jax
import jax.numpy as jnp
from jax.experimental import pallas as pl
from jax.experimental.pallas import tpu as pltpu

HIDDEN = 32
LANES = 128      # lane width of the packed slab / output
OUT_ROWS = 8     # pad output sublanes to the native 8-sublane tile


def _mlp_kernel(slab_ref, o_ref):
    """slab_ref: (H+1, 128) f32.
       rows 0..H-1: lane0=w1, lane1=b1, lane2=w2, lane3=b2 (broadcast)
       row  H     : x, lane-dense (N valid lanes, rest zero)
       o_ref: (8, 128) f32, y broadcast across sublanes (unmasked stores)."""
    h_dim = slab_ref.shape[0] - 1

    w1 = slab_ref[0:h_dim, 0:1]       # (H, 1)
    b1 = slab_ref[0:h_dim, 1:2]       # (H, 1)
    w2 = slab_ref[0:h_dim, 2:3]       # (H, 1)
    b2 = slab_ref[0:1, 3:4]           # (1, 1)
    x = slab_ref[h_dim:h_dim + 1, :]  # (1, 128) lane-dense

    # Device_1: Linear(1->H) + ReLU.  K=1 contraction == rank-1 outer product,
    # done as a VPU broadcast multiply ((H,1) x (1,N)) instead of an MXU dot.
    h = jnp.maximum(w1 * x + b1, 0.0)                 # (H, 128)

    # Device_2: Linear(H->1).  Single output row: lane-wise multiply plus a
    # cross-sublane (XLU) reduce instead of a second MXU dot.
    y = jnp.sum(h * w2, axis=0, keepdims=True) + b2   # (1, 128)

    # Broadcast across the 8 output sublanes -> fully unmasked vst.
    o_ref[...] = jnp.broadcast_to(y, o_ref.shape)


def pack_params(w1, b1, w2, b2, hidden=HIDDEN):
    """One-time packing of the module parameters into the static part of the
    kernel's single VMEM slab.

    w1: (1, H), b1: (1, H)   Device_1 Linear(1->H)   (x @ w1 + b1)
    w2: (H, 1), b2: (1, 1)   Device_2 Linear(H->1)   (h @ w2 + b2)
    Returns: (H, 128) f32 slab with param columns in lanes 0..3.
    """
    slab = jnp.zeros((hidden, LANES), jnp.float32)
    slab = slab.at[:, 0].set(w1.reshape(-1).astype(jnp.float32))
    slab = slab.at[:, 1].set(b1.reshape(-1).astype(jnp.float32))
    slab = slab.at[:, 2].set(w2.reshape(-1).astype(jnp.float32))
    slab = slab.at[:, 3].set(jnp.full((hidden,), b2.reshape(()).astype(jnp.float32)))
    return slab


def multi_device_forward(x, param_slab):
    """x: (N, 1) f32 with N <= 128; param_slab: (H, 128) from pack_params."""
    n = x.shape[0]
    h = param_slab.shape[0]
    assert n <= LANES, "small-N path; add the batch grid for larger N"

    # Fold the per-call x into the same slab as one extra lane-dense row
    # (a ~512 B XLA copy) so the kernel has exactly ONE input DMA.
    x_row = jnp.zeros((1, LANES), jnp.float32).at[0, :n].set(
        x.reshape(-1).astype(jnp.float32))
    slab = jnp.concatenate([param_slab, x_row], axis=0)       # (H+1, 128)

    cost = pl.CostEstimate(
        flops=4 * n * h,            # two ~N*H multiply-add layers
        transcendentals=0,
        bytes_accessed=(slab.size + OUT_ROWS * LANES) * 4,
    )
    out = pl.pallas_call(
        _mlp_kernel,
        out_shape=jax.ShapeDtypeStruct((OUT_ROWS, LANES), jnp.float32),
        in_specs=[pl.BlockSpec(memory_space=pltpu.MemorySpace.VMEM)],
        out_specs=pl.BlockSpec(memory_space=pltpu.MemorySpace.VMEM),
        compiler_params=pltpu.CompilerParams(vmem_limit_bytes=512 * 1024),
        cost_estimate=cost,
    )(slab)
    # Layout plumbing only: row 0, first N lanes -> (N, 1).
    return out[0, :n].reshape(n, 1)


def init_params(key, hidden=HIDDEN):
    # Deterministic PyTorch-style Linear init: U(-1/sqrt(fan_in), 1/sqrt(fan_in))
    k1, k2, k3, k4 = jax.random.split(key, 4)
    bound1 = 1.0  # fan_in = 1
    w1 = jax.random.uniform(k1, (1, hidden), jnp.float32, -bound1, bound1)
    b1 = jax.random.uniform(k2, (1, hidden), jnp.float32, -bound1, bound1)
    bound2 = 1.0 / jnp.sqrt(hidden)
    w2 = jax.random.uniform(k3, (hidden, 1), jnp.float32, -bound2, bound2)
    b2 = jax.random.uniform(k4, (1, 1), jnp.float32, -bound2, bound2)
    return w1, b1, w2, b2


if __name__ == "__main__":
    # Same input as the PyTorch script: [-7, ..., 7] shaped (15, 1).
    x = jnp.arange(-7, 8, dtype=jnp.float32).reshape(-1, 1)

    w1, b1, w2, b2 = init_params(jax.random.PRNGKey(0))
    param_slab = pack_params(w1, b1, w2, b2)

    out = multi_device_forward(x, param_slab)
    out = jax.block_until_ready(out)

    # Pure-JAX reference: Device_1 (Linear+ReLU) then Device_2 (Linear).
    ref = jnp.maximum(x @ w1 + b1, 0.0) @ w2 + b2
    assert out.shape == (15, 1)
    assert jnp.allclose(out, ref, atol=1e-5, rtol=1e-5)

    print("KERNEL_OK")
</pallas_src>

<mosaic_0001>
module attributes {stable_mosaic.version = 11 : i64} {
  func.func @_mlp_kernel(%arg0: memref<33x128xf32, #tpu.memory_space<vmem>>, %arg1: memref<8x128xf32, #tpu.memory_space<vmem>>) attributes {dimension_semantics = [], scalar_prefetch = 0 : i64, scratch_operands = 0 : i64, tpu.core_type = #tpu.core_type<tc>} {
    %c0 = arith.constant 0 : index
    %c0_0 = arith.constant 0 : index
    %0 = vector.load %arg0[%c0, %c0_0] : memref<33x128xf32, #tpu.memory_space<vmem>>, vector<32x1xf32>
    %c0_1 = arith.constant 0 : index
    %c1 = arith.constant 1 : index
    %1 = vector.load %arg0[%c0_1, %c1] : memref<33x128xf32, #tpu.memory_space<vmem>>, vector<32x1xf32>
    %c0_2 = arith.constant 0 : index
    %c2 = arith.constant 2 : index
    %2 = vector.load %arg0[%c0_2, %c2] : memref<33x128xf32, #tpu.memory_space<vmem>>, vector<32x1xf32>
    %c0_3 = arith.constant 0 : index
    %c3 = arith.constant 3 : index
    %3 = vector.load %arg0[%c0_3, %c3] : memref<33x128xf32, #tpu.memory_space<vmem>>, vector<1x1xf32>
    %c32 = arith.constant 32 : index
    %c0_4 = arith.constant 0 : index
    %4 = vector.load %arg0[%c32, %c0_4] : memref<33x128xf32, #tpu.memory_space<vmem>>, vector<1x128xf32>
    %5 = vector.broadcast %0 : vector<32x1xf32> to vector<32x128xf32>
    %6 = vector.broadcast %4 : vector<1x128xf32> to vector<32x128xf32>
    %7 = arith.mulf %5, %6 : vector<32x128xf32>
    %8 = vector.broadcast %1 : vector<32x1xf32> to vector<32x128xf32>
    %9 = arith.addf %7, %8 : vector<32x128xf32>
    %cst = arith.constant 0.000000e+00 : f32
    %10 = vector.broadcast %cst : f32 to vector<32x128xf32>
    %11 = arith.maximumf %9, %10 : vector<32x128xf32>
    %12 = vector.broadcast %2 : vector<32x1xf32> to vector<32x128xf32>
    %13 = arith.mulf %11, %12 : vector<32x128xf32>
    %cst_5 = arith.constant dense<0.000000e+00> : vector<128xf32>
    %14 = vector.multi_reduction <add>, %13, %cst_5 [0] : vector<32x128xf32> to vector<128xf32>
    %15 = vector.shape_cast %14 : vector<128xf32> to vector<1x128xf32>
    %16 = vector.broadcast %3 : vector<1x1xf32> to vector<1x128xf32>
    %17 = arith.addf %15, %16 : vector<1x128xf32>
    %18 = vector.shape_cast %17 : vector<1x128xf32> to vector<1x128xf32>
    %19 = vector.broadcast %18 : vector<1x128xf32> to vector<8x128xf32>
    %c0_6 = arith.constant 0 : index
    %c0_7 = arith.constant 0 : index
    %20 = vector.load %arg1[%c0_6, %c0_7] : memref<8x128xf32, #tpu.memory_space<vmem>>, vector<8x128xf32>
    tpu.vector_store %arg1[%c0_6, %c0_7], %19 {strides = array<i32>} : memref<8x128xf32, #tpu.memory_space<vmem>>, vector<8x128xf32>,
    return
  }
}

</mosaic_0001>

<llo_original>
// kernel: tpu_custom_call.1
$region0: #{tpu_custom_call.1}
  #allocation0 [shape = 'u32[]', space=smem, size = 0x4, offset = 0x4, fixed_abs, tag = 'smem constant byte address 0x4 - core index']
  #allocation1 [shape = 'u32[144,128]{1,0:T(1,128)}', space=vmem, size = 0x12000, scoped, tag = 'internal scratch']
  %s0 = inlined_call_operand.hbm [shape: f32[33,128], index: 0, kind: input, shape index: {}]
  %s1 = inlined_call_operand.hbm [shape: f32[8,128], index: 1, kind: output, shape index: {}]
  %s2 = sld [smem:[#allocation0]]
  $region18: #{tpu_custom_call.1} parent=0
    _
  %s4 = ssub.s32 1, %s2
  %s5 = scalar_select 0, %s4, %s2
  $region1: #{tpu_custom_call.1} parent=0
    #allocation2 [shape = 'u8[20480]{0}', space=vmem, size = 0x5000, scoped, tag = 'input window, operand 0, single buffered']
    #allocation3 [shape = 's32[1]{0}', space=sflag, size = 0x4, scoped, tag = 'scoped memory for tpu_custom_call.1']
    #allocation4 [shape = 's32[1]{0}', space=sflag, size = 0x4, scoped, tag = 'scoped memory for tpu_custom_call.1']
    #allocation5 [shape = 'u8[4096]{0}', space=vmem, size = 0x1000, scoped, tag = 'output window, operand 0, single buffered']
    %6 = vsyncpa [#allocation3], 0
    %7 = vsyncpa [#allocation4], 0
    // Predicated region
    $region2: #{tpu_custom_call.1} parent=1 // pred_check
      _
    $region3: #{tpu_custom_call.1} parent=1 // pred_check_branch
      %9 = sbr.rel (0) target = $region5
    $region4: #{tpu_custom_call.1} parent=1 // pred_region
      %s11 = ssub.s32 640, 640
      %12 = vsyncadd [#allocation3], %s11
      %s13 = sshll.u32 [#allocation2], 4
      %s14 = int_to_ptr.vmem [resolvable:$true] %s13
      %19 = dma.hbm_to_vmem [thread:$0]  %s0, 640, %s14, [#allocation3], 128, 128, 8
    $region5: #{tpu_custom_call.1} parent=1 // pred_fallthru
      _
    // Predicated region
    $region6: #{tpu_custom_call.1} parent=1 // pred_check
      _
    $region7: #{tpu_custom_call.1} parent=1 // pred_check_branch
      %21 = sbr.rel (0) target = $region9
    $region8: #{tpu_custom_call.1} parent=1 // pred_region
      %22 = dma.done [#allocation3], 640
    $region9: #{tpu_custom_call.1} parent=1 // pred_fallthru
      _
    %v23 = vld [vmem:[#allocation2] sm:$0xff]
    %v24 = vld [vmem:[#allocation2 + $0x8] sm:$0xff]
    %v25 = vld [vmem:[#allocation2 + $0x10] sm:$0xff]
    %v26 = vld [vmem:[#allocation2 + $0x18] sm:$0xff]
    %v27 = vld [vmem:[#allocation2] sm:$0x1]
    %v28 = vld [vmem:[#allocation2 + $0x20] sm:$0x1]
    %30 = vset.pattern.permute.xlu0 0
    %31 = vperm.xlu0 %30, %v23
    %v32 = vpop.permute.xlu0 %31
    %35 = vset.pattern.permute.xlu0 0
    %36 = vperm.xlu0 %35, %v24
    %v37 = vpop.permute.xlu0 %36
    %40 = vset.pattern.permute.xlu0 0
    %41 = vperm.xlu0 %40, %v25
    %v42 = vpop.permute.xlu0 %41
    %45 = vset.pattern.permute.xlu0 0
    %46 = vperm.xlu0 %45, %v26
    %v47 = vpop.permute.xlu0 %46
    %v49 = vlaneseq
    %v50 = vshrl.u32 %v49, 7
    %v51 = vsub.s32 0, %v50
    %v52 = vrot.slane %v28, %v51
    %v53 = vmul.f32 %v32, %v52
    %v54 = vmul.f32 %v37, %v52
    %v55 = vmul.f32 %v42, %v52
    %v56 = vmul.f32 %v47, %v52
    %57 = vset.pattern.permute.xlu0 1
    %58 = vperm.xlu0 %57, %v23
    %v59 = vpop.permute.xlu0 %58
    %61 = vset.pattern.permute.xlu0 1
    %62 = vperm.xlu0 %61, %v24
    %v63 = vpop.permute.xlu0 %62
    %65 = vset.pattern.permute.xlu0 1
    %66 = vperm.xlu0 %65, %v25
    %v67 = vpop.permute.xlu0 %66
    %69 = vset.pattern.permute.xlu0 1
    %70 = vperm.xlu0 %69, %v26
    %v71 = vpop.permute.xlu0 %70
    %v73 = vadd.f32 %v53, %v59
    %v74 = vadd.f32 %v54, %v63
    %v75 = vadd.f32 %v55, %v67
    %v76 = vadd.f32 %v56, %v71
    %v77 = vmax.f32 %v73, 0.0
    %v78 = vmax.f32 %v74, 0.0
    %v79 = vmax.f32 %v75, 0.0
    %v80 = vmax.f32 %v76, 0.0
    %81 = vset.pattern.permute.xlu0 2
    %82 = vperm.xlu0 %81, %v23
    %v83 = vpop.permute.xlu0 %82
    %85 = vset.pattern.permute.xlu0 2
    %86 = vperm.xlu0 %85, %v24
    %v87 = vpop.permute.xlu0 %86
    %89 = vset.pattern.permute.xlu0 2
    %90 = vperm.xlu0 %89, %v25
    %v91 = vpop.permute.xlu0 %90
    %93 = vset.pattern.permute.xlu0 2
    %94 = vperm.xlu0 %93, %v26
    %v95 = vpop.permute.xlu0 %94
    %v97 = vmul.f32 %v77, %v83
    %v98 = vmul.f32 %v78, %v87
    %v99 = vmul.f32 %v79, %v91
    %v100 = vmul.f32 %v80, %v95
    %v101 = vadd.f32 %v97, %v98
    %v102 = vadd.f32 %v101, %v99
    %v103 = vadd.f32 %v102, %v100
    %v104 = vrot.slane %v103, 4
    %v105 = vadd.f32 %v103, %v104
    %v106 = vrot.slane %v105, 2
    %v107 = vadd.f32 %v105, %v106
    %v108 = vrot.slane %v107, 1
    %v109 = vadd.f32 %v107, %v108
    %111 = vset.pattern.permute.xlu0 3
    %112 = vperm.xlu0 %111, %v27
    %v113 = vpop.permute.xlu0 %112
    %v115 = vadd.f32 %v109, %v113
    %v116 = vlaneseq
    %v117 = vshrl.u32 %v116, 7
    %v118 = vsub.s32 0, %v117
    %v119 = vrot.slane %v115, %v118
    %120 = vst [vmem:[#allocation5] sm:$0xff] %v119
    // Predicated region
    $region10: #{tpu_custom_call.1} parent=1 // pred_check
      _
    $region11: #{tpu_custom_call.1} parent=1 // pred_check_branch
      %122 = sbr.rel (0) target = $region13
    $region12: #{tpu_custom_call.1} parent=1 // pred_region
      %s124 = ssub.s32 128, 128
      %125 = vsyncadd [#allocation4], %s124
      %s127 = sshll.u32 [#allocation5], 4
      %s128 = int_to_ptr.vmem [resolvable:$true] %s127
      %130 = dma.vmem_to_hbm [thread:$0]  %s128, 128, %s1, [#allocation4]
    $region13: #{tpu_custom_call.1} parent=1 // pred_fallthru
      _
    // Predicated region
    $region14: #{tpu_custom_call.1} parent=1 // pred_check
      _
    $region15: #{tpu_custom_call.1} parent=1 // pred_check_branch
      %132 = sbr.rel (0) target = $region17
    $region16: #{tpu_custom_call.1} parent=1 // pred_region
      %133 = dma.done [#allocation4], 128
    $region17: #{tpu_custom_call.1} parent=1 // pred_fallthru
      _
    %134 = vsyncpa [#allocation3], 1
    %135 = vsyncpa [#allocation4], 1

</llo_original>
